<compile_context>
chip_gen: v7x
topology: tpu7x:2x2x1
jax: 0.10.0
libtpu: 0.0.40
codegen_flags: <defaults>
</compile_context>

<pallas_src>
import jax
import jax.numpy as jnp
from jax.experimental import pallas as pl
from jax.experimental.pallas import tpu as pltpu


def _policy_selector_kernel(scal_ref, w1_ref, x_ref, score_ref, o_ref):
    # scal_ref : SMEM f32[2]       -> [fused_bias, w2_score]
    # w1_ref   : VMEM [1, D]       -> fused first-layer weight row (w1 * w2[0,0])
    # x_ref    : VMEM [tb, D]      -> inputs, native layout (batch on sublanes)
    # score_ref: VMEM f32[1, tb]
    # o_ref    : VMEM f32[1, tb]   -> lane-dense output tile
    h = jax.lax.dot_general(
        w1_ref[...], x_ref[...],
        dimension_numbers=(((1,), (1,)), ((), ())),      # contract D with D
        preferred_element_type=jnp.float32)              # [1, tb], lane-dense
    z = h + score_ref[...] * scal_ref[1] + scal_ref[0]
    o_ref[...] = jax.nn.sigmoid(z)                       # exp + recip on EUP


def policy_selector_forward(x, score, w1, b1, w2, b2, *,
                            x_transport_dtype=None,
                            vmem_budget_bytes=16 << 20):
    """x: [B, D], score: [B, 1]; weights as in nn.Linear. Returns [B, 1] probs.

    x_transport_dtype: optional dtype (e.g. jnp.bfloat16) for moving x through
    HBM; the matmul accumulates in f32 and the epilogue stays f32.
    vmem_budget_bytes: budget for the double-buffered x tiles (16 MiB default
    is safe on v7x's 64 MiB VMEM; raise on v5e/v6e for larger tiles).
    """
    B, D = x.shape
    f32 = jnp.float32

    xd = jnp.dtype(x_transport_dtype) if x_transport_dtype is not None else jnp.dtype(x.dtype)
    x_in = x if x.dtype == xd else x.astype(xd)          # no extra pass in the common case
    itemsize = xd.itemsize

    # Host-side folding of affine2 / b1 into affine1 (algebraically exact):
    #   z = x @ (w1 * w2[0,0])^T + score * w2[0,1] + (b1*w2[0,0] + b2)
    w2f = w2.reshape(1, 2).astype(f32)
    w1f = (w1.reshape(1, D).astype(f32) * w2f[0, 0]).astype(xd)          # [1, D]
    fused_bias = b1.reshape(()).astype(f32) * w2f[0, 0] + b2.reshape(()).astype(f32)
    scalars = jnp.stack([fused_bias, w2f[0, 1]]).astype(f32)             # [2] -> SMEM

    # score [B,1] -> [1,B] is a trivial reshape (same element order), no transpose.
    score_row = score.astype(f32).reshape(1, B)

    # --- batch-tile selection (HBM-roofline oriented) -----------------------
    LANE = 128
    b_lanes = pl.cdiv(B, LANE) * LANE
    # Double-buffered x tiles must fit the VMEM budget: 2 * tb * D * itemsize.
    cap = max((vmem_budget_bytes // (2 * D * itemsize)) // LANE * LANE, LANE)
    tb = min(cap, b_lanes)
    # Keep the grid >= 2 steps so the "parallel" axis shards across both TCs (v7x).
    if b_lanes > LANE and pl.cdiv(b_lanes, tb) < 2:
        tb = max(pl.cdiv(b_lanes, 2 * LANE) * LANE, LANE)
    num_blocks = pl.cdiv(B, tb)

    if num_blocks == 1:
        # Single tile: block shapes == full array shapes (exact, no masking).
        x_block, row_block = (B, D), (1, B)
    else:
        # Multi-tile: tb is a multiple of 128; last block may be partial
        # (OOB lanes only feed elementwise ops and are masked on store).
        x_block, row_block = (tb, D), (1, tb)

    # Explicit scoped-VMEM limit (v5e default is 16 MiB); includes buffers + slack.
    vmem_limit = int(min(max(2 * tb * D * itemsize + 8 * tb * 4 + (4 << 20),
                             16 << 20), 48 << 20))

    out = pl.pallas_call(
        _policy_selector_kernel,
        out_shape=jax.ShapeDtypeStruct((1, B), f32),
        grid=(num_blocks,),
        in_specs=[
            pl.BlockSpec(memory_space=pltpu.SMEM),            # fused scalars
            pl.BlockSpec((1, D), lambda i: (0, 0)),           # fused weight row (resident)
            pl.BlockSpec(x_block, lambda i: (i, 0)),          # x tile, native [B, D]
            pl.BlockSpec(row_block, lambda i: (0, i)),        # score tile
        ],
        out_specs=pl.BlockSpec(row_block, lambda i: (0, i)),
        compiler_params=pltpu.CompilerParams(
            dimension_semantics=("parallel",),
            vmem_limit_bytes=vmem_limit),
        cost_estimate=pl.CostEstimate(
            flops=2 * B * D + 3 * B,
            transcendentals=B,
            bytes_accessed=B * D * itemsize + 2 * B * 4 + D * itemsize),
        # TODO(synk): optionally set pipeline_mode=pl.Buffered(3) on the x spec
        # if xprof still shows exposed DMA latency with the larger tiles.
    )(scalars, w1f, x_in, score_row)

    return out[0, :].reshape(B, 1)


if __name__ == "__main__":
    B = 8            # batch
    D = 32           # input_size

    key = jax.random.PRNGKey(0)
    kx, ks, kw1, kb1, kw2, kb2 = jax.random.split(key, 6)

    # Inputs
    x = jax.random.normal(kx, (B, D), dtype=jnp.float32)
    score = jax.random.normal(ks, (B, 1), dtype=jnp.float32)

    # Deterministic params (shapes match nn.Linear(input_size,1) / Linear(2,1))
    bound1 = 1.0 / jnp.sqrt(D)
    w1 = jax.random.uniform(kw1, (1, D), minval=-bound1, maxval=bound1,
                            dtype=jnp.float32)
    b1 = jax.random.uniform(kb1, (1,), minval=-bound1, maxval=bound1,
                            dtype=jnp.float32)
    bound2 = 1.0 / jnp.sqrt(2.0)
    w2 = jax.random.uniform(kw2, (1, 2), minval=-bound2, maxval=bound2,
                            dtype=jnp.float32)
    b2 = jax.random.uniform(kb2, (1,), minval=-bound2, maxval=bound2,
                            dtype=jnp.float32)

    # Reference in plain JAX (same math as the PyTorch module)
    h_ref = x @ w1.T + b1
    cat_ref = jnp.concatenate([h_ref, score], axis=-1)
    ref = jax.nn.sigmoid(cat_ref @ w2.T + b2)

    # 1) f32 transport (exact parity with the module)
    out = jax.block_until_ready(policy_selector_forward(x, score, w1, b1, w2, b2))
    assert out.shape == (B, 1)
    assert jnp.allclose(out, ref, atol=1e-5, rtol=1e-5), (out, ref)

    # 2) bf16 transport of x (halves dominant HBM read; looser tolerance)
    out_bf16 = jax.block_until_ready(
        policy_selector_forward(x, score, w1, b1, w2, b2,
                                x_transport_dtype=jnp.bfloat16))
    assert jnp.allclose(out_bf16, ref, atol=1e-2, rtol=1e-2), (out_bf16, ref)

    # 3) Multi-block path (uneven grid, partial last tile) at a larger batch
    B2 = 300
    x2 = jax.random.normal(kx, (B2, D), dtype=jnp.float32)
    score2 = jax.random.normal(ks, (B2, 1), dtype=jnp.float32)
    out2 = jax.block_until_ready(
        policy_selector_forward(x2, score2, w1, b1, w2, b2))
    h2 = x2 @ w1.T + b1
    ref2 = jax.nn.sigmoid(jnp.concatenate([h2, score2], axis=-1) @ w2.T + b2)
    assert out2.shape == (B2, 1)
    assert jnp.allclose(out2, ref2, atol=1e-5, rtol=1e-5)

    print("KERNEL_OK")
</pallas_src>

<mosaic_0001>
module attributes {stable_mosaic.version = 11 : i64} {
  func.func @_policy_selector_kernel(%arg0: i32, %arg1: memref<2xf32, #tpu.memory_space<smem>>, %arg2: memref<1x32xf32, #tpu.memory_space<vmem>>, %arg3: memref<8x32xf32, #tpu.memory_space<vmem>>, %arg4: memref<1x8xf32, #tpu.memory_space<vmem>>, %arg5: memref<1x8xf32, #tpu.memory_space<vmem>>) attributes {dimension_semantics = [#tpu.dimension_semantics<parallel>], iteration_bounds = array<i64: 1>, scalar_prefetch = 0 : i64, scratch_operands = 0 : i64, tpu.core_type = #tpu.core_type<tc>, window_params = [{transform_indices = @transform_0, window_bounds = array<i64: 2>}, {pipeline_mode = #tpu.pipeline_mode<synchronous>, transform_indices = @transform_1, window_bounds = array<i64: 1, 32>}, {transform_indices = @transform_2, window_bounds = array<i64: 8, 32>}, {transform_indices = @transform_3, window_bounds = array<i64: 1, 8>}, {transform_indices = @transform_4, window_bounds = array<i64: 1, 8>}]} {
    %c0 = arith.constant 0 : index
    %c0_0 = arith.constant 0 : index
    %0 = vector.load %arg2[%c0, %c0_0] : memref<1x32xf32, #tpu.memory_space<vmem>>, vector<1x32xf32>
    %c0_1 = arith.constant 0 : index
    %c0_2 = arith.constant 0 : index
    %1 = vector.load %arg3[%c0_1, %c0_2] : memref<8x32xf32, #tpu.memory_space<vmem>>, vector<8x32xf32>
    %cst = arith.constant dense<0.000000e+00> : vector<1x8xf32>
    %2 = tpu.matmul %0, %1, %cst {dimension_numbers = #tpu.dot_dimension_numbers<[1], [1], [0], [0], [0, 0, 1, 0], [], []>} : vector<1x32xf32>, vector<8x32xf32>, vector<1x8xf32> -> vector<1x8xf32>
    %c0_3 = arith.constant 0 : index
    %c0_4 = arith.constant 0 : index
    %3 = vector.load %arg4[%c0_3, %c0_4] : memref<1x8xf32, #tpu.memory_space<vmem>>, vector<1x8xf32>
    %c1 = arith.constant 1 : index
    %4 = memref.load %arg1[%c1] : memref<2xf32, #tpu.memory_space<smem>>
    %5 = vector.broadcast %4 : f32 to vector<1x8xf32>
    %6 = arith.mulf %3, %5 : vector<1x8xf32>
    %7 = arith.addf %2, %6 : vector<1x8xf32>
    %c0_5 = arith.constant 0 : index
    %8 = memref.load %arg1[%c0_5] : memref<2xf32, #tpu.memory_space<smem>>
    %9 = vector.broadcast %8 : f32 to vector<1x8xf32>
    %10 = arith.addf %7, %9 : vector<1x8xf32>
    %11 = arith.negf %10 : vector<1x8xf32>
    %12 = math.exp %11 : vector<1x8xf32>
    %cst_6 = arith.constant 1.000000e+00 : f32
    %13 = vector.broadcast %cst_6 : f32 to vector<1x8xf32>
    %14 = arith.addf %13, %12 : vector<1x8xf32>
    %15 = arith.divf %13, %14 : vector<1x8xf32>
    %c0_7 = arith.constant 0 : index
    %c0_8 = arith.constant 0 : index
    %16 = vector.load %arg5[%c0_7, %c0_8] : memref<1x8xf32, #tpu.memory_space<vmem>>, vector<1x8xf32>
    tpu.vector_store %arg5[%c0_7, %c0_8], %15 {strides = array<i32>} : memref<1x8xf32, #tpu.memory_space<vmem>>, vector<1x8xf32>,
    return
  }
  func.func @transform_0(%arg0: i32) -> i32 {
    %c0_i32 = arith.constant 0 : i32
    %c0_i32_0 = arith.constant 0 : i32
    return %c0_i32 : i32
  }
  func.func @transform_1(%arg0: i32) -> (i32, i32) {
    %c0_i32 = arith.constant 0 : i32
    %c0_i32_0 = arith.constant 0 : i32
    %c0_i32_1 = arith.constant 0 : i32
    return %c0_i32, %c0_i32_0 : i32, i32
  }
  func.func @transform_2(%arg0: i32) -> (i32, i32) {
    %c0_i32 = arith.constant 0 : i32
    %c0_i32_0 = arith.constant 0 : i32
    return %arg0, %c0_i32 : i32, i32
  }
  func.func @transform_3(%arg0: i32) -> (i32, i32) {
    %c0_i32 = arith.constant 0 : i32
    %c0_i32_0 = arith.constant 0 : i32
    return %c0_i32, %arg0 : i32, i32
  }
  func.func @transform_4(%arg0: i32) -> (i32, i32) {
    %c0_i32 = arith.constant 0 : i32
    %c0_i32_0 = arith.constant 0 : i32
    return %c0_i32, %arg0 : i32, i32
  }
}

</mosaic_0001>

<llo_original>
// kernel: tpu_custom_call.1
$region0: #{tpu_custom_call.1}
  #allocation0 [shape = 'u32[]', space=smem, size = 0x4, offset = 0x4, fixed_abs, tag = 'smem constant byte address 0x4 - core index']
  #allocation1 [shape = 'u32[144,128]{1,0:T(1,128)}', space=vmem, size = 0x12000, scoped, tag = 'internal scratch']
  %s0 = inlined_call_operand.hbm [shape: f32[2], index: 0, kind: input, shape index: {}]
  %s1 = inlined_call_operand.vmem [shape: f32[1,32], index: 1, kind: input, shape index: {}]
  %s2 = inlined_call_operand.hbm [shape: f32[8,32], index: 2, kind: input, shape index: {}]
  %s3 = inlined_call_operand.vmem [shape: f32[1,8], index: 3, kind: input, shape index: {}]
  %s4 = inlined_call_operand.hbm [shape: f32[1,8], index: 4, kind: output, shape index: {}]
  %s5 = sld [smem:[#allocation0]]
  $region34: #{tpu_custom_call.1} parent=0
    _
  %s7 = ssub.s32 1, %s5
  %s8 = scalar_select 0, %s7, %s5
  $region1: #{tpu_custom_call.1} parent=0
    #allocation2 [shape = 'u8[512]{0}', space=smem, size = 0x200, scoped, tag = 'input window, operand 0, single buffered']
    #allocation3 [shape = 's32[1]{0}', space=sflag, size = 0x4, scoped, tag = 'scoped memory for tpu_custom_call.1']
    #allocation4 [shape = 's32[1]{0}', space=sflag, size = 0x4, scoped, tag = 'scoped memory for tpu_custom_call.1']
    #allocation5 [shape = 's32[1]{0}', space=sflag, size = 0x4, scoped, tag = 'scoped memory for tpu_custom_call.1']
    #allocation6 [shape = 'u8[4096]{0}', space=vmem, size = 0x1000, scoped, tag = 'input window, operand 2, single buffered']
    #allocation7 [shape = 'u8[512]{0}', space=vmem, size = 0x400, scoped, tag = 'output window, operand 0, single buffered']
    %9 = vsyncpa [#allocation5], 0
    %10 = vsyncpa [#allocation3], 0
    %11 = vsyncpa [#allocation4], 0
    // Predicated region
    $region2: #{tpu_custom_call.1} parent=1 // pred_check
      _
    $region3: #{tpu_custom_call.1} parent=1 // pred_check_branch
      %13 = sbr.rel (0) target = $region5
    $region4: #{tpu_custom_call.1} parent=1 // pred_region
      %s15 = ssub.s32 16, 16
      %16 = vsyncadd [#allocation5], %s15
      %19 = dma.hbm_to_smem %s0, 16, [#allocation2], [#allocation5]
    $region5: #{tpu_custom_call.1} parent=1 // pred_fallthru
      _
    // Predicated region
    $region6: #{tpu_custom_call.1} parent=1 // pred_check
      _
    $region7: #{tpu_custom_call.1} parent=1 // pred_check_branch
      %21 = sbr.rel (0) target = $region9
    $region8: #{tpu_custom_call.1} parent=1 // pred_region
      _
    $region9: #{tpu_custom_call.1} parent=1 // pred_fallthru
      _
    // Predicated region
    $region10: #{tpu_custom_call.1} parent=1 // pred_check
      _
    $region11: #{tpu_custom_call.1} parent=1 // pred_check_branch
      %23 = sbr.rel (0) target = $region13
    $region12: #{tpu_custom_call.1} parent=1 // pred_region
      %s25 = ssub.s32 128, 128
      %26 = vsyncadd [#allocation3], %s25
      %s28 = sshll.u32 [#allocation6], 4
      %s29 = int_to_ptr.vmem [resolvable:$true] %s28
      %31 = dma.hbm_to_vmem [thread:$0]  %s2, 128, %s29, [#allocation3]
    $region13: #{tpu_custom_call.1} parent=1 // pred_fallthru
      _
    // Predicated region
    $region14: #{tpu_custom_call.1} parent=1 // pred_check
      _
    $region15: #{tpu_custom_call.1} parent=1 // pred_check_branch
      %33 = sbr.rel (0) target = $region17
    $region16: #{tpu_custom_call.1} parent=1 // pred_region
      _
    $region17: #{tpu_custom_call.1} parent=1 // pred_fallthru
      _
    // Predicated region
    $region18: #{tpu_custom_call.1} parent=1 // pred_check
      _
    $region19: #{tpu_custom_call.1} parent=1 // pred_check_branch
      %35 = sbr.rel (0) target = $region21
    $region20: #{tpu_custom_call.1} parent=1 // pred_region
      %36 = dma.done [#allocation5], 16
    $region21: #{tpu_custom_call.1} parent=1 // pred_fallthru
      _
    // Predicated region
    $region22: #{tpu_custom_call.1} parent=1 // pred_check
      _
    $region23: #{tpu_custom_call.1} parent=1 // pred_check_branch
      %38 = sbr.rel (0) target = $region25
    $region24: #{tpu_custom_call.1} parent=1 // pred_region
      %39 = dma.done [#allocation3], 128
    $region25: #{tpu_custom_call.1} parent=1 // pred_fallthru
      _
    %40 = sfence
    %v41 = vld [vmem:[%s1] sm:$0x1]
    %v42 = vld [vmem:[#allocation6] sm:$0xff]
    %v43 = vld [vmem:[%s3] sm:$0x1]
    %s44 = sld [smem:[#allocation2 + $0x1]]
    %v45 = vstv %s44
    %v46 = vmul.f32 %v43, %v45
    %vm47 = vcmask 261120
    %v49 = vsel %vm47, %v41, 0
    %v52 = vsel %vm47, %v42, 0
    %54 = vmatprep.subr.mxu0 0.0
    %55 = vmatpush1.xpose.msra.mxu0 %v52
    %56 = vmatprep.subr.mxu0 0.0
    %57 = vmatpush1.xpose.msra.mxu0 0.0
    %58 = vmatprep.subr.mxu0 0.0
    %59 = vmatpush1.xpose.msra.mxu0 0.0
    %60 = vmatprep.subr.mxu0 0.0
    %61 = vmatpush1.xpose.msra.mxu0 0.0
    %62 = vmatprep.subr.mxu0 0.0
    %63 = vmatpush1.xpose.msra.mxu0 0.0
    %64 = vmatprep.subr.mxu0 0.0
    %65 = vmatpush1.xpose.msra.mxu0 0.0
    %66 = vmatprep.subr.mxu0 0.0
    %67 = vmatpush1.xpose.msra.mxu0 0.0
    %68 = vmatprep.subr.mxu0 0.0
    %69 = vmatpush1.xpose.msra.mxu0 0.0
    %70 = vmatprep.subr.mxu0 0.0
    %71 = vmatpush1.xpose.msra.mxu0 0.0
    %72 = vmatprep.subr.mxu0 0.0
    %73 = vmatpush1.xpose.msra.mxu0 0.0
    %74 = vmatprep.subr.mxu0 0.0
    %75 = vmatpush1.xpose.msra.mxu0 0.0
    %76 = vmatprep.subr.mxu0 0.0
    %77 = vmatpush1.xpose.msra.mxu0 0.0
    %78 = vmatprep.subr.mxu0 0.0
    %79 = vmatpush1.xpose.msra.mxu0 0.0
    %80 = vmatprep.subr.mxu0 0.0
    %81 = vmatpush1.xpose.msra.mxu0 0.0
    %82 = vmatprep.subr.mxu0 0.0
    %83 = vmatpush1.xpose.msra.mxu0 0.0
    %84 = vmatprep.subr.mxu0 0.0
    %85 = vmatpush1.xpose.msra.mxu0 0.0
    %86 = vmatprep.subr.mxu0 0.0
    %87 = vmatpush1.xpose.msra.mxu0 0.0
    %88 = vmatprep.subr.mxu0 0.0
    %89 = vmatpush1.xpose.msra.mxu0 0.0
    %90 = vmatprep.subr.mxu0 0.0
    %91 = vmatpush1.xpose.msra.mxu0 0.0
    %92 = vmatprep.subr.mxu0 0.0
    %93 = vmatpush1.xpose.msra.mxu0 0.0
    %94 = vmatprep.subr.mxu0 0.0
    %95 = vmatpush1.xpose.msra.mxu0 0.0
    %96 = vmatprep.subr.mxu0 0.0
    %97 = vmatpush1.xpose.msra.mxu0 0.0
    %98 = vmatprep.subr.mxu0 0.0
    %99 = vmatpush1.xpose.msra.mxu0 0.0
    %100 = vmatprep.subr.mxu0 0.0
    %101 = vmatpush1.xpose.msra.mxu0 0.0
    %102 = vmatprep.subr.mxu0 0.0
    %103 = vmatpush1.xpose.msra.mxu0 0.0
    %104 = vmatprep.subr.mxu0 0.0
    %105 = vmatpush1.xpose.msra.mxu0 0.0
    %106 = vmatprep.subr.mxu0 0.0
    %107 = vmatpush1.xpose.msra.mxu0 0.0
    %108 = vmatprep.subr.mxu0 0.0
    %109 = vmatpush1.xpose.msra.mxu0 0.0
    %110 = vmatprep.subr.mxu0 0.0
    %111 = vmatpush1.xpose.msra.mxu0 0.0
    %112 = vmatprep.subr.mxu0 0.0
    %113 = vmatpush1.xpose.msra.mxu0 0.0
    %114 = vmatprep.subr.mxu0 0.0
    %115 = vmatpush1.xpose.msra.mxu0 0.0
    %116 = vmatprep.subr.mxu0 0.0
    %117 = vmatpush1.xpose.msra.mxu0 0.0
    %118 = vmatprep.mubr.f32.mxu0 0.0
    %119 = vmatmul.mubr.f32.gmra.mrb[0].mxu0 %v49
    %v120 = vpop.f32.mrb[0].mxu0
    %v121 = vadd.f32 %v46, %v120
    %v122 = vpop.f32.mrb[0].mxu0
    %123 = vdwg.mxu0
    %s124 = sld [smem:[#allocation2]]
    %v125 = vstv %s124
    %v126 = vadd.f32 %v121, %v125
    %v127 = vxor.u32 %v126, 2147483648
    %v128 = vmul.f32 %v127, 1.442695
    %v129 = vpow.pop %v128
    %v130 = vadd.f32 %v129, 1.0
    %v131 = vrcp.pop %v130
    %v132 = vmul.f32 1.0, %v131
    %vm133 = vcmask 57344
    %134 = vst.msk [vmem:[#allocation7] sm:$0x1] %vm133, %v132
    // Predicated region
    $region26: #{tpu_custom_call.1} parent=1 // pred_check
      _
    $region27: #{tpu_custom_call.1} parent=1 // pred_check_branch
      %136 = sbr.rel (0) target = $region29
    $region28: #{tpu_custom_call.1} parent=1 // pred_region
      %s138 = ssub.s32 16, 16
      %139 = vsyncadd [#allocation4], %s138
      %s141 = sshll.u32 [#allocation7], 4
      %s142 = int_to_ptr.vmem [resolvable:$true] %s141
      %144 = dma.vmem_to_hbm [thread:$0]  %s142, 16, %s4, [#allocation4]
    $region29: #{tpu_custom_call.1} parent=1 // pred_fallthru
      _
    // Predicated region
    $region30: #{tpu_custom_call.1} parent=1 // pred_check
      _
    $region31: #{tpu_custom_call.1} parent=1 // pred_check_branch
      %146 = sbr.rel (0) target = $region33
    $region32: #{tpu_custom_call.1} parent=1 // pred_region
      %147 = dma.done [#allocation4], 16
    $region33: #{tpu_custom_call.1} parent=1 // pred_fallthru
      _
    %148 = vsyncpa [#allocation3], 1
    %149 = vsyncpa [#allocation4], 1
    %150 = vsyncpa [#allocation5], 1

</llo_original>
